<compile_context>
chip_gen: v6e
topology: v6e:2x2x1
jax: 0.10.0
libtpu: 0.0.40
codegen_flags: <defaults>
</compile_context>

<pallas_src>
import jax
import jax.numpy as jnp
from jax.experimental import pallas as pl
from jax.experimental.pallas import tpu as pltpu


def tcl_kernel(up_ref, x_ref, o_ref):
    # up_ref: SMEM (1,) scalar parameter
    # x_ref / o_ref: VMEM (TILE_R, LANE) tiles
    up = up_ref[0]
    # up - relu(up - relu(x))  ==  min(relu(x), up)   (exact for any real up)
    o_ref[...] = jnp.minimum(jnp.maximum(x_ref[...], 0.0), up)


def tcl_forward(x, up, *, lane=1024, tile_r=512):
    """x: (N, C, H, W) float32; up: (1,) float32 scalar parameter."""
    orig_shape = x.shape
    orig_dtype = x.dtype
    total = x.size

    # --- Lane-dense flattening: last dim is a large multiple of 128 ---------
    flat = x.reshape(-1)
    lane_pad = (-total) % lane
    if lane_pad:
        flat = jnp.pad(flat, (0, lane_pad))
    rows = flat.shape[0] // lane
    x2d = flat.reshape(rows, lane)

    # Pad rows up to a multiple of 8 (sublane alignment for the block shape).
    row_pad = (-rows) % 8
    if row_pad:
        x2d = jnp.pad(x2d, ((0, row_pad), (0, 0)))
        rows += row_pad

    # Tile rows; block dims are (multiple of 8, multiple of 128). Pallas masks
    # any out-of-bounds tail block produced by cdiv.
    block_r = min(tile_r, rows)
    grid = (pl.cdiv(rows, block_r),)

    out2d = pl.pallas_call(
        tcl_kernel,
        out_shape=jax.ShapeDtypeStruct((rows, lane), orig_dtype),
        grid=grid,
        in_specs=[
            pl.BlockSpec(memory_space=pltpu.SMEM),              # up scalar
            pl.BlockSpec((block_r, lane), lambda i: (i, 0)),    # input tile
        ],
        out_specs=pl.BlockSpec((block_r, lane), lambda i: (i, 0)),
        compiler_params=pltpu.CompilerParams(
            dimension_semantics=("parallel",),
        ),
    )(up, x2d)

    # Strip padding and restore the original NCHW shape.
    out_flat = out2d.reshape(-1)[:total]
    return out_flat.reshape(orig_shape)


if __name__ == "__main__":
    key = jax.random.PRNGKey(0)
    x = jax.random.normal(key, (2, 4, 16, 16), dtype=jnp.float32) * 3.0

    # Deterministic parameter init, matching nn.Parameter(torch.Tensor([4.0]))
    up = jnp.array([4.0], dtype=jnp.float32)

    out = tcl_forward(x, up)
    out = jax.block_until_ready(out)

    # Reference check in plain JAX (original formulation)
    ref = up[0] - jnp.maximum(up[0] - jnp.maximum(x, 0.0), 0.0)
    assert out.shape == x.shape
    assert jnp.allclose(out, ref, atol=1e-6), "mismatch vs reference"

    print("KERNEL_OK")
</pallas_src>

<mosaic_0001>
module attributes {stable_mosaic.version = 11 : i64} {
  func.func @tcl_kernel(%arg0: i32, %arg1: memref<1xf32, #tpu.memory_space<smem>>, %arg2: memref<8x1024xf32, #tpu.memory_space<vmem>>, %arg3: memref<8x1024xf32, #tpu.memory_space<vmem>>) attributes {dimension_semantics = [#tpu.dimension_semantics<parallel>], iteration_bounds = array<i64: 1>, scalar_prefetch = 0 : i64, scratch_operands = 0 : i64, tpu.core_type = #tpu.core_type<tc>, window_params = [{transform_indices = @transform_0, window_bounds = array<i64: 1>}, {transform_indices = @transform_1, window_bounds = array<i64: 8, 1024>}, {transform_indices = @transform_2, window_bounds = array<i64: 8, 1024>}]} {
    %c0 = arith.constant 0 : index
    %0 = memref.load %arg1[%c0] : memref<1xf32, #tpu.memory_space<smem>>
    %c0_0 = arith.constant 0 : index
    %c0_1 = arith.constant 0 : index
    %1 = vector.load %arg2[%c0_0, %c0_1] : memref<8x1024xf32, #tpu.memory_space<vmem>>, vector<8x1024xf32>
    %cst = arith.constant 0.000000e+00 : f32
    %2 = vector.broadcast %cst : f32 to vector<8x1024xf32>
    %3 = arith.maximumf %1, %2 : vector<8x1024xf32>
    %4 = vector.broadcast %0 : f32 to vector<8x1024xf32>
    %5 = arith.minimumf %3, %4 : vector<8x1024xf32>
    %c0_2 = arith.constant 0 : index
    %c0_3 = arith.constant 0 : index
    %6 = vector.load %arg3[%c0_2, %c0_3] : memref<8x1024xf32, #tpu.memory_space<vmem>>, vector<8x1024xf32>
    tpu.vector_store %arg3[%c0_2, %c0_3], %5 {strides = array<i32>} : memref<8x1024xf32, #tpu.memory_space<vmem>>, vector<8x1024xf32>,
    return
  }
  func.func @transform_0(%arg0: i32) -> i32 {
    %c0_i32 = arith.constant 0 : i32
    %c0_i32_0 = arith.constant 0 : i32
    return %c0_i32 : i32
  }
  func.func @transform_1(%arg0: i32) -> (i32, i32) {
    %c0_i32 = arith.constant 0 : i32
    %c0_i32_0 = arith.constant 0 : i32
    return %arg0, %c0_i32 : i32, i32
  }
  func.func @transform_2(%arg0: i32) -> (i32, i32) {
    %c0_i32 = arith.constant 0 : i32
    %c0_i32_0 = arith.constant 0 : i32
    return %arg0, %c0_i32 : i32, i32
  }
}

</mosaic_0001>

<llo_original>
// kernel: tpu_custom_call.1
$region0: #{tpu_custom_call.1}
  #allocation0 [shape = 'u32[]', space=smem, size = 0x4, offset = 0x4, fixed_abs, tag = 'smem constant byte address 0x4 - core index']
  #allocation1 [shape = 'u32[144,128]{1,0:T(1,128)}', space=vmem, size = 0x12000, scoped, tag = 'internal scratch']
  #allocation2 [shape = 'f32[1]{0:T(128)S(6)}', space=smem, size = 0x200, scoped, tag = 'scoped memory for tpu_custom_call.1']
  %s0 = inlined_call_operand.<no memory space> [shape: f32[1], index: 0, kind: input, shape index: {}]
  %s1 = inlined_call_operand.hbm [shape: f32[8,1024], index: 1, kind: input, shape index: {}]
  %s2 = inlined_call_operand.hbm [shape: f32[8,1024], index: 2, kind: output, shape index: {}]
  %s3 = sld [smem:[#allocation0]]
  $region22: #{tpu_custom_call.1} parent=0
    _
  %s5 = ssub.s32 1, %s3
  %s6 = scalar_select 0, %s5, %s3
  %7 = sst [smem:[#allocation2]] %s0
  $region1: #{tpu_custom_call.1} parent=0
    #allocation3 [shape = 'u8[32768]{0}', space=vmem, size = 0x8000, scoped, tag = 'input window, operand 1, single buffered']
    #allocation4 [shape = 's32[1]{0}', space=sflag, size = 0x4, scoped, tag = 'scoped memory for tpu_custom_call.1']
    #allocation5 [shape = 's32[1]{0}', space=sflag, size = 0x4, scoped, tag = 'scoped memory for tpu_custom_call.1']
    #allocation6 [shape = 'u8[32768]{0}', space=vmem, size = 0x8000, scoped, tag = 'output window, operand 0, single buffered']
    %8 = vsyncpa [#allocation4], 0
    %9 = vsyncpa [#allocation5], 0
    // Predicated region
    $region2: #{tpu_custom_call.1} parent=1 // pred_check
      _
    $region3: #{tpu_custom_call.1} parent=1 // pred_check_branch
      %11 = sbr.rel (0) target = $region5
    $region4: #{tpu_custom_call.1} parent=1 // pred_region
      _
    $region5: #{tpu_custom_call.1} parent=1 // pred_fallthru
      _
    // Predicated region
    $region6: #{tpu_custom_call.1} parent=1 // pred_check
      _
    $region7: #{tpu_custom_call.1} parent=1 // pred_check_branch
      %13 = sbr.rel (0) target = $region9
    $region8: #{tpu_custom_call.1} parent=1 // pred_region
      %s15 = ssub.s32 1024, 1024
      %16 = vsyncadd [#allocation4], %s15
      %s18 = sshll.u32 [#allocation3], 4
      %s19 = int_to_ptr.vmem [resolvable:$true] %s18
      %21 = dma.hbm_to_vmem [thread:$0]  %s1, 1024, %s19, [#allocation4]
    $region9: #{tpu_custom_call.1} parent=1 // pred_fallthru
      _
    // Predicated region
    $region10: #{tpu_custom_call.1} parent=1 // pred_check
      _
    $region11: #{tpu_custom_call.1} parent=1 // pred_check_branch
      %23 = sbr.rel (0) target = $region13
    $region12: #{tpu_custom_call.1} parent=1 // pred_region
      %24 = dma.done [#allocation4], 1024
    $region13: #{tpu_custom_call.1} parent=1 // pred_fallthru
      _
    %s25 = sld [smem:[#allocation2]]
    %v26 = vld [vmem:[#allocation3] sm:$0xff]
    %v27 = vld [vmem:[#allocation3 + $0x8] sm:$0xff]
    %v28 = vld [vmem:[#allocation3 + $0x10] sm:$0xff]
    %v29 = vld [vmem:[#allocation3 + $0x18] sm:$0xff]
    %v30 = vld [vmem:[#allocation3 + $0x20] sm:$0xff]
    %v31 = vld [vmem:[#allocation3 + $0x28] sm:$0xff]
    %v32 = vld [vmem:[#allocation3 + $0x30] sm:$0xff]
    %v33 = vld [vmem:[#allocation3 + $0x38] sm:$0xff]
    %v34 = vmax.f32 %v26, 0.0
    %v35 = vmax.f32 %v27, 0.0
    %v36 = vmax.f32 %v28, 0.0
    %v37 = vmax.f32 %v29, 0.0
    %v38 = vmax.f32 %v30, 0.0
    %v39 = vmax.f32 %v31, 0.0
    %v40 = vmax.f32 %v32, 0.0
    %v41 = vmax.f32 %v33, 0.0
    %v42 = vstv %s25
    %v43 = vmin.f32 %v34, %v42
    %v44 = vmin.f32 %v35, %v42
    %v45 = vmin.f32 %v36, %v42
    %v46 = vmin.f32 %v37, %v42
    %v47 = vmin.f32 %v38, %v42
    %v48 = vmin.f32 %v39, %v42
    %v49 = vmin.f32 %v40, %v42
    %v50 = vmin.f32 %v41, %v42
    %51 = vst [vmem:[#allocation6] sm:$0xff] %v43
    %52 = vst [vmem:[#allocation6 + $0x8] sm:$0xff] %v44
    %53 = vst [vmem:[#allocation6 + $0x10] sm:$0xff] %v45
    %54 = vst [vmem:[#allocation6 + $0x18] sm:$0xff] %v46
    %55 = vst [vmem:[#allocation6 + $0x20] sm:$0xff] %v47
    %56 = vst [vmem:[#allocation6 + $0x28] sm:$0xff] %v48
    %57 = vst [vmem:[#allocation6 + $0x30] sm:$0xff] %v49
    %58 = vst [vmem:[#allocation6 + $0x38] sm:$0xff] %v50
    // Predicated region
    $region14: #{tpu_custom_call.1} parent=1 // pred_check
      _
    $region15: #{tpu_custom_call.1} parent=1 // pred_check_branch
      %60 = sbr.rel (0) target = $region17
    $region16: #{tpu_custom_call.1} parent=1 // pred_region
      %s62 = ssub.s32 1024, 1024
      %63 = vsyncadd [#allocation5], %s62
      %s65 = sshll.u32 [#allocation6], 4
      %s66 = int_to_ptr.vmem [resolvable:$true] %s65
      %68 = dma.vmem_to_hbm [thread:$0]  %s66, 1024, %s2, [#allocation5]
    $region17: #{tpu_custom_call.1} parent=1 // pred_fallthru
      _
    // Predicated region
    $region18: #{tpu_custom_call.1} parent=1 // pred_check
      _
    $region19: #{tpu_custom_call.1} parent=1 // pred_check_branch
      %70 = sbr.rel (0) target = $region21
    $region20: #{tpu_custom_call.1} parent=1 // pred_region
      %71 = dma.done [#allocation5], 1024
    $region21: #{tpu_custom_call.1} parent=1 // pred_fallthru
      _
    %72 = vsyncpa [#allocation4], 1
    %73 = vsyncpa [#allocation5], 1

</llo_original>
